<compile_context>
chip_gen: v5e
topology: v5e:2x2
jax: 0.10.0
libtpu: 0.0.40
codegen_flags: <defaults>
</compile_context>

<pallas_src>
from typing import NamedTuple

import jax
import jax.numpy as jnp
from jax.experimental import pallas as pl
from jax.experimental.pallas import tpu as pltpu


_VMEM_TARGET = 44 << 20   # shrink batch tile until the estimate fits under this
_VMEM_CAP = 52 << 20      # requested scoped-VMEM cap (safely below v7x 64 MiB)


def _round_up(x, m):
    return ((x + m - 1) // m) * m


def _cdiv(a, b):
    return -(-a // b)


class MLPMeta(NamedTuple):
    state_dim: int
    hidden_dim: int
    action_dim: int
    s_pad: int
    h_pad: int
    a_pad: int
    hidden_tile: int
    num_hidden_tiles: int
    tiled: bool


# --------------------------------------------------------------------------- #
# Kernels
# --------------------------------------------------------------------------- #
def _mlp_kernel_resident(x_ref, w1_ref, b1_ref, w2_ref, b2_ref, w3_ref, b3_ref,
                         o_ref):
    # x arrives f32; cast to bf16 on-chip (VPU slot has slack) for the MXU.
    x = x_ref[...].astype(jnp.bfloat16)
    h = jnp.dot(x, w1_ref[...], preferred_element_type=jnp.float32)
    h = jnp.maximum(h + b1_ref[...], 0.0).astype(jnp.bfloat16)      # fused bias+relu+downcast
    h = jnp.dot(h, w2_ref[...], preferred_element_type=jnp.float32)
    h = jnp.maximum(h + b2_ref[...], 0.0).astype(jnp.bfloat16)
    out = jnp.dot(h, w3_ref[...], preferred_element_type=jnp.float32) + b3_ref[...]
    o_ref[...] = out.astype(o_ref.dtype)


def _mlp_kernel_hidden_tiled(x_ref, w1_ref, b1_ref, w2_ref, b2_ref, w3_ref,
                             b3_ref, o_ref, acc_ref):
    # Hidden-dim tiled path: per hidden block j, compute h1[:, j-block] and
    # accumulate its contribution to h2 (pre-activation) in an f32 scratch.
    j = pl.program_id(1)

    @pl.when(j == 0)
    def _():
        acc_ref[...] = jnp.zeros_like(acc_ref)

    x = x_ref[...].astype(jnp.bfloat16)
    h1 = jnp.dot(x, w1_ref[...], preferred_element_type=jnp.float32)
    h1 = jnp.maximum(h1 + b1_ref[...], 0.0).astype(jnp.bfloat16)
    acc_ref[...] += jnp.dot(h1, w2_ref[...], preferred_element_type=jnp.float32)

    @pl.when(j == pl.num_programs(1) - 1)
    def _():
        h2 = jnp.maximum(acc_ref[...] + b2_ref[...], 0.0).astype(jnp.bfloat16)
        out = jnp.dot(h2, w3_ref[...], preferred_element_type=jnp.float32) + b3_ref[...]
        o_ref[...] = out.astype(o_ref.dtype)


# --------------------------------------------------------------------------- #
# VMEM accounting (includes buffer multiplicity)
# --------------------------------------------------------------------------- #
def _resident_vmem_estimate(TB, S_p, H_p, A_p):
    w = 2 * (S_p * H_p + H_p * H_p + H_p * A_p)        # bf16 weights, Buffered(1)
    b = 4 * (2 * H_p + A_p)                            # f32 biases, Buffered(1)
    io = 2 * TB * S_p * 4 + 2 * TB * A_p * 4           # double-buffered f32 x/out tiles
    act = 2 * TB * H_p * 6                             # h1/h2: f32 result + bf16 copy
    return w + b + io + act


def _tiled_vmem_estimate(TB, S_p, H_p, A_p, TH):
    w_res = 2 * H_p * A_p                              # w3 resident, Buffered(1)
    w_str = 2 * (2 * S_p * TH + 2 * TH * H_p)          # streamed w1/w2 tiles, 2 buffers
    b = 4 * (2 * H_p + A_p)
    io = 2 * TB * S_p * 4 + 2 * TB * A_p * 4
    acc = TB * H_p * 4
    act = TB * TH * 6 + TB * H_p * 4
    return w_res + w_str + b + io + acc + act


# --------------------------------------------------------------------------- #
# One-time parameter preparation (pad + bf16 cast, path selection)
# --------------------------------------------------------------------------- #
def prepare_params(params, *, feat_align=128, block_h=512,
                   resident_weight_budget_bytes=32 << 20):
    """Pad / cast weights once. Returns (packed_params, meta)."""
    w1, b1, w2, b2, w3, b3 = (params[k] for k in ("w1", "b1", "w2", "b2", "w3", "b3"))
    S, H = w1.shape
    A = w3.shape[1]

    S_p = _round_up(S, feat_align)
    A_p = _round_up(A, feat_align)

    # Decide resident-vs-tiled from the (single-buffered) resident weight bytes.
    H_res = _round_up(H, feat_align)
    resident_weight_bytes = 2 * (S_p * H_res + H_res * H_res + H_res * A_p)
    if resident_weight_bytes <= resident_weight_budget_bytes:
        tiled = False
        H_p, TH, nh = H_res, H_res, 1
    else:
        tiled = True
        TH = min(block_h, _round_up(H, 128))
        nh = _cdiv(H, TH)
        H_p = nh * TH

    def pad2(a, rows, cols, dtype):
        return jnp.pad(a, ((0, rows - a.shape[0]), (0, cols - a.shape[1]))).astype(dtype)

    packed = {
        "w1": pad2(w1, S_p, H_p, jnp.bfloat16),
        "b1": pad2(b1, 1, H_p, jnp.float32),
        "w2": pad2(w2, H_p, H_p, jnp.bfloat16),
        "b2": pad2(b2, 1, H_p, jnp.float32),
        "w3": pad2(w3, H_p, A_p, jnp.bfloat16),
        "b3": pad2(b3, 1, A_p, jnp.float32),
    }
    meta = MLPMeta(S, H, A, S_p, H_p, A_p, TH, nh, tiled)
    return packed, meta


# --------------------------------------------------------------------------- #
# Forward
# --------------------------------------------------------------------------- #
def mlp_forward(x, pparams, meta, *, block_b=512):
    """x: (B, state_dim) f32. pparams/meta from prepare_params(). Returns (B, action_dim) f32."""
    B, S = x.shape
    assert S == meta.state_dim
    S_p, H_p, A_p, A = meta.s_pad, meta.h_pad, meta.a_pad, meta.action_dim

    # Padding-aware batch tile; >=2 grid steps for big batches (v7x 2-TC split).
    nb = _cdiv(B, block_b)
    if nb == 1 and B >= 256:
        nb = 2
    TB = _round_up(_cdiv(B, nb), 16)

    if meta.tiled:
        est = lambda tb: _tiled_vmem_estimate(tb, S_p, H_p, A_p, meta.hidden_tile)
    else:
        est = lambda tb: _resident_vmem_estimate(tb, S_p, H_p, A_p)
    while TB > 128 and est(TB) > _VMEM_TARGET:
        TB //= 2
    nb = _cdiv(B, TB)
    B_p = nb * TB
    vmem_limit = int(min(max(1.35 * est(TB), 16 << 20), _VMEM_CAP))

    # x stays f32; zero padding keeps the math exact.
    x_p = jnp.pad(x, ((0, B_p - B), (0, S_p - S)))

    w1, b1, w2, b2, w3, b3 = (pparams[k] for k in ("w1", "b1", "w2", "b2", "w3", "b3"))

    def resident(shape, imap):
        # Constant index_map -> stays in VMEM; single buffer (no wasted 2nd copy).
        return pl.BlockSpec(shape, imap, pipeline_mode=pl.Buffered(1))

    if not meta.tiled:
        out_p = pl.pallas_call(
            _mlp_kernel_resident,
            out_shape=jax.ShapeDtypeStruct((B_p, A_p), jnp.float32),
            grid=(nb,),
            in_specs=[
                pl.BlockSpec((TB, S_p), lambda i: (i, 0)),           # streamed batch tile
                resident(w1.shape, lambda i: (0, 0)),
                resident(b1.shape, lambda i: (0, 0)),
                resident(w2.shape, lambda i: (0, 0)),
                resident(b2.shape, lambda i: (0, 0)),
                resident(w3.shape, lambda i: (0, 0)),
                resident(b3.shape, lambda i: (0, 0)),
            ],
            out_specs=pl.BlockSpec((TB, A_p), lambda i: (i, 0)),
            compiler_params=pltpu.CompilerParams(
                dimension_semantics=("parallel",),
                vmem_limit_bytes=vmem_limit),
        )(x_p, w1, b1, w2, b2, w3, b3)
    else:
        TH, nh = meta.hidden_tile, meta.num_hidden_tiles
        out_p = pl.pallas_call(
            _mlp_kernel_hidden_tiled,
            out_shape=jax.ShapeDtypeStruct((B_p, A_p), jnp.float32),
            grid=(nb, nh),
            in_specs=[
                pl.BlockSpec((TB, S_p), lambda i, j: (i, 0)),        # constant over j -> no re-DMA
                pl.BlockSpec((S_p, TH), lambda i, j: (0, j)),        # w1 column block
                pl.BlockSpec((1, TH),   lambda i, j: (0, j)),        # b1 block
                pl.BlockSpec((TH, H_p), lambda i, j: (j, 0)),        # w2 row block
                resident(b2.shape, lambda i, j: (0, 0)),
                resident(w3.shape, lambda i, j: (0, 0)),
                resident(b3.shape, lambda i, j: (0, 0)),
            ],
            out_specs=pl.BlockSpec((TB, A_p), lambda i, j: (i, 0)),
            scratch_shapes=[pltpu.VMEM((TB, H_p), jnp.float32)],     # h2 accumulator
            compiler_params=pltpu.CompilerParams(
                dimension_semantics=("parallel", "arbitrary"),
                vmem_limit_bytes=vmem_limit),
        )(x_p, w1, b1, w2, b2, w3, b3)

    return out_p[:B, :A]


# --------------------------------------------------------------------------- #
# Init (mimics nn.Linear U(-1/sqrt(fan_in), 1/sqrt(fan_in)); weights (in, out))
# --------------------------------------------------------------------------- #
def init_params(key, state_dim, action_dim, hidden_dim):
    ks = jax.random.split(key, 6)

    def lin(kw, kb, fan_in, fan_out):
        bound = 1.0 / jnp.sqrt(fan_in)
        w = jax.random.uniform(kw, (fan_in, fan_out), jnp.float32, -bound, bound)
        b = jax.random.uniform(kb, (1, fan_out), jnp.float32, -bound, bound)
        return w, b

    w1, b1 = lin(ks[0], ks[1], state_dim, hidden_dim)
    w2, b2 = lin(ks[2], ks[3], hidden_dim, hidden_dim)
    w3, b3 = lin(ks[4], ks[5], hidden_dim, action_dim)
    return {"w1": w1, "b1": b1, "w2": w2, "b2": b2, "w3": w3, "b3": b3}


if __name__ == "__main__":
    key = jax.random.PRNGKey(0)
    k_x, k_p = jax.random.split(key)

    batch, state_dim, action_dim, hidden_dim = 2, 8, 4, 32
    x = jax.random.normal(k_x, (batch, state_dim), jnp.float32)
    params = init_params(k_p, state_dim, action_dim, hidden_dim)

    # Plain-JAX f32 reference.
    h = jnp.maximum(x @ params["w1"] + params["b1"], 0.0)
    h = jnp.maximum(h @ params["w2"] + params["b2"], 0.0)
    ref = h @ params["w3"] + params["b3"]

    fwd = jax.jit(mlp_forward, static_argnums=(2,))

    # Path A: resident-weight kernel (normal case).
    pparams, meta = prepare_params(params)
    out = jax.block_until_ready(fwd(x, pparams, meta))
    assert out.shape == (batch, action_dim)
    assert jnp.allclose(out, ref, atol=5e-2, rtol=5e-2), (
        f"resident path max abs err = {jnp.max(jnp.abs(out - ref))}")

    # Path B: hidden-dim-tiled fallback (forced here to exercise the v7x path).
    pparams_t, meta_t = prepare_params(params, resident_weight_budget_bytes=0)
    out_t = jax.block_until_ready(fwd(x, pparams_t, meta_t))
    assert out_t.shape == (batch, action_dim)
    assert jnp.allclose(out_t, ref, atol=5e-2, rtol=5e-2), (
        f"tiled path max abs err = {jnp.max(jnp.abs(out_t - ref))}")

    print("KERNEL_OK")
</pallas_src>

<mosaic_0001>
module attributes {stable_mosaic.version = 11 : i64} {
  func.func @_mlp_kernel_resident(%arg0: i32, %arg1: memref<16x128xf32, #tpu.memory_space<vmem>>, %arg2: memref<128x128xbf16, #tpu.memory_space<vmem>>, %arg3: memref<1x128xf32, #tpu.memory_space<vmem>>, %arg4: memref<128x128xbf16, #tpu.memory_space<vmem>>, %arg5: memref<1x128xf32, #tpu.memory_space<vmem>>, %arg6: memref<128x128xbf16, #tpu.memory_space<vmem>>, %arg7: memref<1x128xf32, #tpu.memory_space<vmem>>, %arg8: memref<16x128xf32, #tpu.memory_space<vmem>>) attributes {dimension_semantics = [#tpu.dimension_semantics<parallel>], iteration_bounds = array<i64: 1>, scalar_prefetch = 0 : i64, scratch_operands = 0 : i64, tpu.core_type = #tpu.core_type<tc>, window_params = [{transform_indices = @transform_0, window_bounds = array<i64: 16, 128>}, {pipeline_mode = #tpu.pipeline_mode<synchronous>, transform_indices = @transform_1, window_bounds = array<i64: 128, 128>}, {pipeline_mode = #tpu.pipeline_mode<synchronous>, transform_indices = @transform_2, window_bounds = array<i64: 1, 128>}, {pipeline_mode = #tpu.pipeline_mode<synchronous>, transform_indices = @transform_3, window_bounds = array<i64: 128, 128>}, {pipeline_mode = #tpu.pipeline_mode<synchronous>, transform_indices = @transform_4, window_bounds = array<i64: 1, 128>}, {pipeline_mode = #tpu.pipeline_mode<synchronous>, transform_indices = @transform_5, window_bounds = array<i64: 128, 128>}, {pipeline_mode = #tpu.pipeline_mode<synchronous>, transform_indices = @transform_6, window_bounds = array<i64: 1, 128>}, {transform_indices = @transform_7, window_bounds = array<i64: 16, 128>}]} {
    %c0 = arith.constant 0 : index
    %c0_0 = arith.constant 0 : index
    %0 = vector.load %arg1[%c0, %c0_0] : memref<16x128xf32, #tpu.memory_space<vmem>>, vector<16x128xf32>
    %1 = arith.truncf %0 : vector<16x128xf32> to vector<16x128xbf16>
    %c0_1 = arith.constant 0 : index
    %c0_2 = arith.constant 0 : index
    %2 = vector.load %arg2[%c0_1, %c0_2] : memref<128x128xbf16, #tpu.memory_space<vmem>>, vector<128x128xbf16>
    %cst = arith.constant dense<0.000000e+00> : vector<16x128xf32>
    %3 = tpu.matmul %1, %2, %cst {dimension_numbers = #tpu.dot_dimension_numbers<[1], [0], [0], [1], [0, 0, 1, 1], [], []>} : vector<16x128xbf16>, vector<128x128xbf16>, vector<16x128xf32> -> vector<16x128xf32>
    %c0_3 = arith.constant 0 : index
    %c0_4 = arith.constant 0 : index
    %4 = vector.load %arg3[%c0_3, %c0_4] : memref<1x128xf32, #tpu.memory_space<vmem>>, vector<1x128xf32>
    %5 = vector.broadcast %4 : vector<1x128xf32> to vector<16x128xf32>
    %6 = arith.addf %3, %5 : vector<16x128xf32>
    %cst_5 = arith.constant 0.000000e+00 : f32
    %7 = vector.broadcast %cst_5 : f32 to vector<16x128xf32>
    %8 = arith.maximumf %6, %7 : vector<16x128xf32>
    %9 = arith.truncf %8 : vector<16x128xf32> to vector<16x128xbf16>
    %c0_6 = arith.constant 0 : index
    %c0_7 = arith.constant 0 : index
    %10 = vector.load %arg4[%c0_6, %c0_7] : memref<128x128xbf16, #tpu.memory_space<vmem>>, vector<128x128xbf16>
    %cst_8 = arith.constant dense<0.000000e+00> : vector<16x128xf32>
    %11 = tpu.matmul %9, %10, %cst_8 {dimension_numbers = #tpu.dot_dimension_numbers<[1], [0], [0], [1], [0, 0, 1, 1], [], []>} : vector<16x128xbf16>, vector<128x128xbf16>, vector<16x128xf32> -> vector<16x128xf32>
    %c0_9 = arith.constant 0 : index
    %c0_10 = arith.constant 0 : index
    %12 = vector.load %arg5[%c0_9, %c0_10] : memref<1x128xf32, #tpu.memory_space<vmem>>, vector<1x128xf32>
    %13 = vector.broadcast %12 : vector<1x128xf32> to vector<16x128xf32>
    %14 = arith.addf %11, %13 : vector<16x128xf32>
    %cst_11 = arith.constant 0.000000e+00 : f32
    %15 = vector.broadcast %cst_11 : f32 to vector<16x128xf32>
    %16 = arith.maximumf %14, %15 : vector<16x128xf32>
    %17 = arith.truncf %16 : vector<16x128xf32> to vector<16x128xbf16>
    %c0_12 = arith.constant 0 : index
    %c0_13 = arith.constant 0 : index
    %18 = vector.load %arg6[%c0_12, %c0_13] : memref<128x128xbf16, #tpu.memory_space<vmem>>, vector<128x128xbf16>
    %cst_14 = arith.constant dense<0.000000e+00> : vector<16x128xf32>
    %19 = tpu.matmul %17, %18, %cst_14 {dimension_numbers = #tpu.dot_dimension_numbers<[1], [0], [0], [1], [0, 0, 1, 1], [], []>} : vector<16x128xbf16>, vector<128x128xbf16>, vector<16x128xf32> -> vector<16x128xf32>
    %c0_15 = arith.constant 0 : index
    %c0_16 = arith.constant 0 : index
    %20 = vector.load %arg7[%c0_15, %c0_16] : memref<1x128xf32, #tpu.memory_space<vmem>>, vector<1x128xf32>
    %21 = vector.broadcast %20 : vector<1x128xf32> to vector<16x128xf32>
    %22 = arith.addf %19, %21 : vector<16x128xf32>
    %c0_17 = arith.constant 0 : index
    %c0_18 = arith.constant 0 : index
    %23 = vector.load %arg8[%c0_17, %c0_18] : memref<16x128xf32, #tpu.memory_space<vmem>>, vector<16x128xf32>
    tpu.vector_store %arg8[%c0_17, %c0_18], %22 {strides = array<i32>} : memref<16x128xf32, #tpu.memory_space<vmem>>, vector<16x128xf32>,
    return
  }
  func.func @transform_0(%arg0: i32) -> (i32, i32) {
    %c0_i32 = arith.constant 0 : i32
    %c0_i32_0 = arith.constant 0 : i32
    return %arg0, %c0_i32 : i32, i32
  }
  func.func @transform_1(%arg0: i32) -> (i32, i32) {
    %c0_i32 = arith.constant 0 : i32
    %c0_i32_0 = arith.constant 0 : i32
    %c0_i32_1 = arith.constant 0 : i32
    return %c0_i32, %c0_i32_0 : i32, i32
  }
  func.func @transform_2(%arg0: i32) -> (i32, i32) {
    %c0_i32 = arith.constant 0 : i32
    %c0_i32_0 = arith.constant 0 : i32
    %c0_i32_1 = arith.constant 0 : i32
    return %c0_i32, %c0_i32_0 : i32, i32
  }
  func.func @transform_3(%arg0: i32) -> (i32, i32) {
    %c0_i32 = arith.constant 0 : i32
    %c0_i32_0 = arith.constant 0 : i32
    %c0_i32_1 = arith.constant 0 : i32
    return %c0_i32, %c0_i32_0 : i32, i32
  }
  func.func @transform_4(%arg0: i32) -> (i32, i32) {
    %c0_i32 = arith.constant 0 : i32
    %c0_i32_0 = arith.constant 0 : i32
    %c0_i32_1 = arith.constant 0 : i32
    return %c0_i32, %c0_i32_0 : i32, i32
  }
  func.func @transform_5(%arg0: i32) -> (i32, i32) {
    %c0_i32 = arith.constant 0 : i32
    %c0_i32_0 = arith.constant 0 : i32
    %c0_i32_1 = arith.constant 0 : i32
    return %c0_i32, %c0_i32_0 : i32, i32
  }
  func.func @transform_6(%arg0: i32) -> (i32, i32) {
    %c0_i32 = arith.constant 0 : i32
    %c0_i32_0 = arith.constant 0 : i32
    %c0_i32_1 = arith.constant 0 : i32
    return %c0_i32, %c0_i32_0 : i32, i32
  }
  func.func @transform_7(%arg0: i32) -> (i32, i32) {
    %c0_i32 = arith.constant 0 : i32
    %c0_i32_0 = arith.constant 0 : i32
    return %arg0, %c0_i32 : i32, i32
  }
}

</mosaic_0001>

<llo_original>
// kernel: mlp_forward.1
$region0: #{mlp_forward.1}
  #allocation0 [shape = 'u32[]', space=smem, size = 0x4, offset = 0x4, fixed_abs, tag = 'smem constant byte address 0x4 - core index']
  #allocation1 [shape = 'u32[72,128]{1,0:T(1,128)}', space=vmem, size = 0x9000, scoped, tag = 'internal scratch']
  %s0 = inlined_call_operand.vmem [shape: f32[16,128], index: 0, kind: input, shape index: {}]
  %s1 = inlined_call_operand.hbm [shape: bf16[128,128], index: 1, kind: input, shape index: {}]
  %s2 = inlined_call_operand.vmem [shape: f32[1,128], index: 2, kind: input, shape index: {}]
  %s3 = inlined_call_operand.hbm [shape: bf16[128,128], index: 3, kind: input, shape index: {}]
  %s4 = inlined_call_operand.vmem [shape: f32[1,128], index: 4, kind: input, shape index: {}]
  %s5 = inlined_call_operand.hbm [shape: bf16[128,128], index: 5, kind: input, shape index: {}]
  %s6 = inlined_call_operand.vmem [shape: f32[1,128], index: 6, kind: input, shape index: {}]
  %s7 = inlined_call_operand.vmem [shape: f32[16,128], index: 7, kind: output, shape index: {}]
  %s8 = sld [smem:[#allocation0]]
  $region50: #{mlp_forward.1} parent=0
    _
  %s10 = ssub.s32 1, %s8
  %s11 = scalar_select 0, %s10, %s8
  $region1: #{mlp_forward.1} parent=0
    #allocation2 [shape = 'u8[32768]{0}', space=vmem, size = 0x8000, scoped, tag = 'input window, operand 1, single buffered']
    #allocation3 [shape = 's32[1]{0}', space=sflag, size = 0x4, scoped, tag = 'scoped memory for mlp_forward.1']
    #allocation4 [shape = 'u8[32768]{0}', space=vmem, size = 0x8000, scoped, tag = 'input window, operand 3, single buffered']
    #allocation5 [shape = 's32[1]{0}', space=sflag, size = 0x4, scoped, tag = 'scoped memory for mlp_forward.1']
    #allocation6 [shape = 'u8[32768]{0}', space=vmem, size = 0x8000, scoped, tag = 'input window, operand 5, single buffered']
    %12 = vsyncpa [#allocation3], 0
    %13 = vsyncpa [#allocation5], 0
    // Predicated region
    $region2: #{mlp_forward.1} parent=1 // pred_check
      _
    $region3: #{mlp_forward.1} parent=1 // pred_check_branch
      %15 = sbr.rel (0) target = $region5
    $region4: #{mlp_forward.1} parent=1 // pred_region
      _
    $region5: #{mlp_forward.1} parent=1 // pred_fallthru
      _
    // Predicated region
    $region6: #{mlp_forward.1} parent=1 // pred_check
      _
    $region7: #{mlp_forward.1} parent=1 // pred_check_branch
      %17 = sbr.rel (0) target = $region9
    $region8: #{mlp_forward.1} parent=1 // pred_region
      %19 = vsyncadd [#allocation3], 0
      %s20 = sshll.u32 %s1, 4
      %s21 = int_to_ptr.hbm [resolvable:$true] %s20
      %s22 = sshll.u32 [#allocation2], 4
      %s23 = int_to_ptr.vmem [resolvable:$true] %s22
      %28 = dma.hbm_to_vmem [thread:$0]  %s21, 1024, %s23, [#allocation3], 64, 64, 4
    $region9: #{mlp_forward.1} parent=1 // pred_fallthru
      _
    // Predicated region
    $region10: #{mlp_forward.1} parent=1 // pred_check
      _
    $region11: #{mlp_forward.1} parent=1 // pred_check_branch
      %30 = sbr.rel (0) target = $region13
    $region12: #{mlp_forward.1} parent=1 // pred_region
      _
    $region13: #{mlp_forward.1} parent=1 // pred_fallthru
      _
    // Predicated region
    $region14: #{mlp_forward.1} parent=1 // pred_check
      _
    $region15: #{mlp_forward.1} parent=1 // pred_check_branch
      %32 = sbr.rel (0) target = $region17
    $region16: #{mlp_forward.1} parent=1 // pred_region
      %34 = vsyncadd [#allocation5], 0
      %s35 = sshll.u32 %s3, 4
      %s36 = int_to_ptr.hbm [resolvable:$true] %s35
      %s37 = sshll.u32 [#allocation4], 4
      %s38 = int_to_ptr.vmem [resolvable:$true] %s37
      %43 = dma.hbm_to_vmem [thread:$0]  %s36, 1024, %s38, [#allocation5], 64, 64, 4
    $region17: #{mlp_forward.1} parent=1 // pred_fallthru
      _
    // Predicated region
    $region18: #{mlp_forward.1} parent=1 // pred_check
      _
    $region19: #{mlp_forward.1} parent=1 // pred_check_branch
      %45 = sbr.rel (0) target = $region21
    $region20: #{mlp_forward.1} parent=1 // pred_region
      _
    $region21: #{mlp_forward.1} parent=1 // pred_fallthru
      _
    // Predicated region
    $region22: #{mlp_forward.1} parent=1 // pred_check
      _
    $region23: #{mlp_forward.1} parent=1 // pred_check_branch
      %47 = sbr.rel (0) target = $region25
    $region24: #{mlp_forward.1} parent=1 // pred_region
      %49 = vsyncadd [#allocation5], 0
      %s50 = sshll.u32 %s5, 4
      %s51 = int_to_ptr.hbm [resolvable:$true] %s50
      %s52 = sshll.u32 [#allocation6], 4
      %s53 = int_to_ptr.vmem [resolvable:$true] %s52
      %58 = dma.hbm_to_vmem [thread:$0]  %s51, 1024, %s53, [#allocation5], 64, 64, 4
    $region25: #{mlp_forward.1} parent=1 // pred_fallthru
      _
    // Predicated region
    $region26: #{mlp_forward.1} parent=1 // pred_check
      _
    $region27: #{mlp_forward.1} parent=1 // pred_check_branch
      %60 = sbr.rel (0) target = $region29
    $region28: #{mlp_forward.1} parent=1 // pred_region
      _
    $region29: #{mlp_forward.1} parent=1 // pred_fallthru
      _
    // Predicated region
    $region30: #{mlp_forward.1} parent=1 // pred_check
      _
    $region31: #{mlp_forward.1} parent=1 // pred_check_branch
      %62 = sbr.rel (0) target = $region33
    $region32: #{mlp_forward.1} parent=1 // pred_region
      %64 = dma.done [#allocation3], 1024
    $region33: #{mlp_forward.1} parent=1 // pred_fallthru
      _
    // Predicated region
    $region34: #{mlp_forward.1} parent=1 // pred_check
      _
    $region35: #{mlp_forward.1} parent=1 // pred_check_branch
      %66 = sbr.rel (0) target = $region37
    $region36: #{mlp_forward.1} parent=1 // pred_region
      %68 = dma.done [#allocation5], 1024
    $region37: #{mlp_forward.1} parent=1 // pred_fallthru
      _
    // Predicated region
    $region38: #{mlp_forward.1} parent=1 // pred_check
      _
    $region39: #{mlp_forward.1} parent=1 // pred_check_branch
      %70 = sbr.rel (0) target = $region41
    $region40: #{mlp_forward.1} parent=1 // pred_region
      %72 = dma.done [#allocation5], 1024
    $region41: #{mlp_forward.1} parent=1 // pred_fallthru
      _
    %v73 = vld [vmem:[%s0] sm:$0xff]
    %v74 = vld [vmem:[%s0 + $0x8] sm:$0xff]
    %v75 = vpack.c.bf16 %v74, %v73
    %v76 = vld [vmem:[#allocation2] sm:$0xf]
    %v77 = vld [vmem:[#allocation2 + $0x4] sm:$0xf]
    %v78 = vld [vmem:[#allocation2 + $0x8] sm:$0xf]
    %v79 = vld [vmem:[#allocation2 + $0xc] sm:$0xf]
    %v80 = vld [vmem:[#allocation2 + $0x10] sm:$0xf]
    %v81 = vld [vmem:[#allocation2 + $0x14] sm:$0xf]
    %v82 = vld [vmem:[#allocation2 + $0x18] sm:$0xf]
    %v83 = vld [vmem:[#allocation2 + $0x1c] sm:$0xf]
    %v84 = vld [vmem:[#allocation2 + $0x20] sm:$0xf]
    %v85 = vld [vmem:[#allocation2 + $0x24] sm:$0xf]
    %v86 = vld [vmem:[#allocation2 + $0x28] sm:$0xf]
    %v87 = vld [vmem:[#allocation2 + $0x2c] sm:$0xf]
    %v88 = vld [vmem:[#allocation2 + $0x30] sm:$0xf]
    %v89 = vld [vmem:[#allocation2 + $0x34] sm:$0xf]
    %v90 = vld [vmem:[#allocation2 + $0x38] sm:$0xf]
    %v91 = vld [vmem:[#allocation2 + $0x3c] sm:$0xf]
    %v92 = vld [vmem:[%s2] sm:$0x1]
    %v94 = vperm.slane %v92, 0
    %v112 = vunpack.c.l.b16 %v76
    %v113 = vunpack.c.l.b16 %v77
    %v114 = vunpack.c.l.b16 %v78
    %v115 = vunpack.c.l.b16 %v79
    %v116 = vunpack.c.l.b16 %v80
    %v117 = vunpack.c.l.b16 %v81
    %v118 = vunpack.c.l.b16 %v82
    %v119 = vunpack.c.l.b16 %v83
    %v120 = vunpack.c.l.b16 %v84
    %v121 = vunpack.c.l.b16 %v85
    %v122 = vunpack.c.l.b16 %v86
    %v123 = vunpack.c.l.b16 %v87
    %v124 = vunpack.c.l.b16 %v88
    %v125 = vunpack.c.l.b16 %v89
    %v126 = vunpack.c.l.b16 %v90
    %v127 = vunpack.c.l.b16 %v91
    %v128 = vpack.c.b16 %v113, %v112
    %v129 = vpack.c.b16 %v115, %v114
    %v130 = vpack.c.b16 %v117, %v116
    %v131 = vpack.c.b16 %v119, %v118
    %v132 = vpack.c.b16 %v121, %v120
    %v133 = vpack.c.b16 %v123, %v122
    %v134 = vpack.c.b16 %v125, %v124
    %v135 = vpack.c.b16 %v127, %v126
    %144 = vmatpush.bf16.msra.mxu0 %v135
    %145 = vmatpush.bf16.msra.mxu0 %v134
    %146 = vmatpush.bf16.msra.mxu0 %v133
    %147 = vmatpush.bf16.msra.mxu0 %v132
    %148 = vmatpush.bf16.msra.mxu0 %v131
    %149 = vmatpush.bf16.msra.mxu0 %v130
    %150 = vmatpush.bf16.msra.mxu0 %v129
    %151 = vmatpush.bf16.msra.mxu0 %v128
    %152 = vmatmul.bf16.gmra.mxu0 %v75
    %v153 = vpop.f32.mrf.mxu0
    %v154 = vadd.f32 %v94, %v153
    %v155 = vpop.f32.mrf.mxu0
    %v156 = vadd.f32 %v94, %v155
    %157 = vdwg.mxu0
    %v158 = vmax.f32 %v154, 0.0
    %v159 = vmax.f32 %v156, 0.0
    %v160 = vpack.c.bf16 %v159, %v158
    %v161 = vld [vmem:[#allocation4] sm:$0xf]
    %v162 = vld [vmem:[#allocation4 + $0x4] sm:$0xf]
    %v163 = vld [vmem:[#allocation4 + $0x8] sm:$0xf]
    %v164 = vld [vmem:[#allocation4 + $0xc] sm:$0xf]
    %v165 = vld [vmem:[#allocation4 + $0x10] sm:$0xf]
    %v166 = vld [vmem:[#allocation4 + $0x14] sm:$0xf]
    %v167 = vld [vmem:[#allocation4 + $0x18] sm:$0xf]
    %v168 = vld [vmem:[#allocation4 + $0x1c] sm:$0xf]
    %v169 = vld [vmem:[#allocation4 + $0x20] sm:$0xf]
    %v170 = vld [vmem:[#allocation4 + $0x24] sm:$0xf]
    %v171 = vld [vmem:[#allocation4 + $0x28] sm:$0xf]
    %v172 = vld [vmem:[#allocation4 + $0x2c] sm:$0xf]
    %v173 = vld [vmem:[#allocation4 + $0x30] sm:$0xf]
    %v174 = vld [vmem:[#allocation4 + $0x34] sm:$0xf]
    %v175 = vld [vmem:[#allocation4 + $0x38] sm:$0xf]
    %v176 = vld [vmem:[#allocation4 + $0x3c] sm:$0xf]
    %v177 = vld [vmem:[%s4] sm:$0x1]
    %v179 = vperm.slane %v177, 0
    %v197 = vunpack.c.l.b16 %v161
    %v198 = vunpack.c.l.b16 %v162
    %v199 = vunpack.c.l.b16 %v163
    %v200 = vunpack.c.l.b16 %v164
    %v201 = vunpack.c.l.b16 %v165
    %v202 = vunpack.c.l.b16 %v166
    %v203 = vunpack.c.l.b16 %v167
    %v204 = vunpack.c.l.b16 %v168
    %v205 = vunpack.c.l.b16 %v169
    %v206 = vunpack.c.l.b16 %v170
    %v207 = vunpack.c.l.b16 %v171
    %v208 = vunpack.c.l.b16 %v172
    %v209 = vunpack.c.l.b16 %v173
    %v210 = vunpack.c.l.b16 %v174
    %v211 = vunpack.c.l.b16 %v175
    %v212 = vunpack.c.l.b16 %v176
    %v213 = vpack.c.b16 %v198, %v197
    %v214 = vpack.c.b16 %v200, %v199
    %v215 = vpack.c.b16 %v202, %v201
    %v216 = vpack.c.b16 %v204, %v203
    %v217 = vpack.c.b16 %v206, %v205
    %v218 = vpack.c.b16 %v208, %v207
    %v219 = vpack.c.b16 %v210, %v209
    %v220 = vpack.c.b16 %v212, %v211
    %229 = vmatpush.bf16.msra.mxu0 %v220
    %230 = vmatpush.bf16.msra.mxu0 %v219
    %231 = vmatpush.bf16.msra.mxu0 %v218
    %232 = vmatpush.bf16.msra.mxu0 %v217
    %233 = vmatpush.bf16.msra.mxu0 %v216
    %234 = vmatpush.bf16.msra.mxu0 %v215
    %235 = vmatpush.bf16.msra.mxu0 %v214
    %236 = vmatpush.bf16.msra.mxu0 %v213
    %237 = vmatmul.bf16.gmra.mxu0 %v160
    %v238 = vpop.f32.mrf.mxu0
    %v239 = vadd.f32 %v179, %v238
    %v240 = vpop.f32.mrf.mxu0
    %v241 = vadd.f32 %v179, %v240
    %242 = vdwg.mxu0
    %v243 = vmax.f32 %v239, 0.0
    %v244 = vmax.f32 %v241, 0.0
    %v245 = vpack.c.bf16 %v244, %v243
    %v246 = vld [vmem:[#allocation6] sm:$0xf]
    %v247 = vld [vmem:[#allocation6 + $0x4] sm:$0xf]
    %v248 = vld [vmem:[#allocation6 + $0x8] sm:$0xf]
    %v249 = vld [vmem:[#allocation6 + $0xc] sm:$0xf]
    %v250 = vld [vmem:[#allocation6 + $0x10] sm:$0xf]
    %v251 = vld [vmem:[#allocation6 + $0x14] sm:$0xf]
    %v252 = vld [vmem:[#allocation6 + $0x18] sm:$0xf]
    %v253 = vld [vmem:[#allocation6 + $0x1c] sm:$0xf]
    %v254 = vld [vmem:[#allocation6 + $0x20] sm:$0xf]
    %v255 = vld [vmem:[#allocation6 + $0x24] sm:$0xf]
    %v256 = vld [vmem:[#allocation6 + $0x28] sm:$0xf]
    %v257 = vld [vmem:[#allocation6 + $0x2c] sm:$0xf]
    %v258 = vld [vmem:[#allocation6 + $0x30] sm:$0xf]
    %v259 = vld [vmem:[#allocation6 + $0x34] sm:$0xf]
    %v260 = vld [vmem:[#allocation6 + $0x38] sm:$0xf]
    %v261 = vld [vmem:[#allocation6 + $0x3c] sm:$0xf]
    %v262 = vld [vmem:[%s6] sm:$0x1]
    %v264 = vperm.slane %v262, 0
    %v282 = vunpack.c.l.b16 %v246
    %v283 = vunpack.c.l.b16 %v247
    %v284 = vunpack.c.l.b16 %v248
    %v285 = vunpack.c.l.b16 %v249
    %v286 = vunpack.c.l.b16 %v250
    %v287 = vunpack.c.l.b16 %v251
    %v288 = vunpack.c.l.b16 %v252
    %v289 = vunpack.c.l.b16 %v253
    %v290 = vunpack.c.l.b16 %v254
    %v291 = vunpack.c.l.b16 %v255
    %v292 = vunpack.c.l.b16 %v256
    %v293 = vunpack.c.l.b16 %v257
    %v294 = vunpack.c.l.b16 %v258
    %v295 = vunpack.c.l.b16 %v259
    %v296 = vunpack.c.l.b16 %v260
    %v297 = vunpack.c.l.b16 %v261
    %v298 = vpack.c.b16 %v283, %v282
    %v299 = vpack.c.b16 %v285, %v284
    %v300 = vpack.c.b16 %v287, %v286
    %v301 = vpack.c.b16 %v289, %v288
    %v302 = vpack.c.b16 %v291, %v290
    %v303 = vpack.c.b16 %v293, %v292
    %v304 = vpack.c.b16 %v295, %v294
    %v305 = vpack.c.b16 %v297, %v296
    %314 = vmatpush.bf16.msra.mxu0 %v305
    %315 = vmatpush.bf16.msra.mxu0 %v304
    %316 = vmatpush.bf16.msra.mxu0 %v303
    %317 = vmatpush.bf16.msra.mxu0 %v302
    %318 = vmatpush.bf16.msra.mxu0 %v301
    %319 = vmatpush.bf16.msra.mxu0 %v300
    %320 = vmatpush.bf16.msra.mxu0 %v299
    %321 = vmatpush.bf16.msra.mxu0 %v298
    %322 = vmatmul.bf16.gmra.mxu0 %v245
    %v323 = vpop.f32.mrf.mxu0
    %v324 = vadd.f32 %v264, %v323
    %v325 = vpop.f32.mrf.mxu0
    %v326 = vadd.f32 %v264, %v325
    %327 = vdwg.mxu0
    %328 = vst [vmem:[%s7] sm:$0xff] %v324
    %329 = vst [vmem:[%s7 + $0x8] sm:$0xff] %v326
    // Predicated region
    $region42: #{mlp_forward.1} parent=1 // pred_check
      _
    $region43: #{mlp_forward.1} parent=1 // pred_check_branch
      %331 = sbr.rel (0) target = $region45
    $region44: #{mlp_forward.1} parent=1 // pred_region
      _
    $region45: #{mlp_forward.1} parent=1 // pred_fallthru
      _
    // Predicated region
    $region46: #{mlp_forward.1} parent=1 // pred_check
      _
    $region47: #{mlp_forward.1} parent=1 // pred_check_branch
      %333 = sbr.rel (0) target = $region49
    $region48: #{mlp_forward.1} parent=1 // pred_region
      _
    $region49: #{mlp_forward.1} parent=1 // pred_fallthru
      _
    %334 = vsyncpa [#allocation3], 1
    %335 = vsyncpa [#allocation5], 1

</llo_original>
